<compile_context>
chip_gen: v5e
topology: v5e:2x2
jax: 0.10.0
libtpu: 0.0.40
codegen_flags: <defaults>
</compile_context>

<pallas_src>
import math
import functools

import jax
import jax.numpy as jnp
from jax.experimental import pallas as pl
from jax.experimental.pallas import tpu as pltpu


def _round_up(x: int, m: int) -> int:
    return ((x + m - 1) // m) * m


def _embed_pe_kernel(ids_ref, pos_ref, emb_ref, pe_ref, out_ref, *, scale):
    # ids_ref: VMEM (TILE, 1) int32  token id per flattened row
    # pos_ref: VMEM (TILE, 1) int32  sequence position per flattened row
    # emb_ref: VMEM (n_vocab, d_model) f32  embedding table (resident)
    # pe_ref:  VMEM (S, d_model) f32       positional encodings (resident)
    # out_ref: VMEM (TILE, d_model) f32
    tile = out_ref.shape[0]
    n_vocab = emb_ref.shape[0]
    s_len = pe_ref.shape[0]

    ids = ids_ref[...]  # (TILE, 1)
    pos = pos_ref[...]  # (TILE, 1)

    v_iota = jax.lax.broadcasted_iota(jnp.int32, (tile, n_vocab), 1)
    p_iota = jax.lax.broadcasted_iota(jnp.int32, (tile, s_len), 1)

    # One-hot gather on the MXU; sqrt(d_model) folded into the vocab one-hot.
    onehot_v = jnp.where(ids == v_iota, jnp.float32(scale), jnp.float32(0.0))
    onehot_p = jnp.where(pos == p_iota, jnp.float32(1.0), jnp.float32(0.0))

    acc = jnp.dot(
        onehot_v, emb_ref[...],
        preferred_element_type=jnp.float32,
        precision=jax.lax.Precision.HIGHEST,
    )
    acc = acc + jnp.dot(
        onehot_p, pe_ref[...],
        preferred_element_type=jnp.float32,
        precision=jax.lax.Precision.HIGHEST,
    )
    out_ref[...] = acc.astype(out_ref.dtype)


def embeddings_with_learned_pe(ids, emb_table, pos_enc, *, tile_rows=256):
    """ids: [S, B] int32; emb_table: [n_vocab, d_model]; pos_enc: [max_len, 1, d_model]."""
    S, B = ids.shape
    n_vocab, d_model = emb_table.shape
    scale = math.sqrt(d_model)

    N = S * B
    tile = min(tile_rows, _round_up(N, 8))   # sublane-aligned row tile
    n_pad = _round_up(N, tile)
    num_tiles = n_pad // tile

    # Positional-encoding rows actually used; squeeze the broadcast batch dim.
    pe2d = pos_enc[:S, 0, :]                                  # (S, d_model)

    # Flatten row-major: flat index i -> (pos = i // B, batch = i % B).
    ids_flat = ids.reshape(N).astype(jnp.int32)
    pos_flat = jnp.arange(N, dtype=jnp.int32) // B
    if n_pad != N:
        pad = n_pad - N
        ids_flat = jnp.pad(ids_flat, (0, pad))                # id 0 is a safe dummy
        pos_flat = jnp.pad(pos_flat, (0, pad), constant_values=S)  # no PE match
    ids2 = ids_flat.reshape(n_pad, 1)
    pos2 = pos_flat.reshape(n_pad, 1)

    kernel = functools.partial(_embed_pe_kernel, scale=scale)

    out_flat = pl.pallas_call(
        kernel,
        out_shape=jax.ShapeDtypeStruct((n_pad, d_model), emb_table.dtype),
        grid_spec=pltpu.PrefetchScalarGridSpec(
            num_scalar_prefetch=0,
            grid=(num_tiles,),
            in_specs=[
                pl.BlockSpec((tile, 1), lambda t: (t, 0)),           # ids
                pl.BlockSpec((tile, 1), lambda t: (t, 0)),           # positions
                pl.BlockSpec((n_vocab, d_model), lambda t: (0, 0)),  # table (VMEM resident)
                pl.BlockSpec((S, d_model), lambda t: (0, 0)),        # PE (VMEM resident)
            ],
            out_specs=pl.BlockSpec((tile, d_model), lambda t: (t, 0)),
        ),
        compiler_params=pltpu.CompilerParams(
            dimension_semantics=("parallel",)),
    )(ids2, pos2, emb_table, pe2d)

    return out_flat[:N].reshape(S, B, d_model)


if __name__ == "__main__":
    # Module hyper-parameters (small, lane-friendly d_model).
    d_model, n_vocab, max_len = 128, 64, 32
    S, B = 8, 2  # sequence length, batch

    key = jax.random.PRNGKey(0)
    k_emb, k_pe, k_ids = jax.random.split(key, 3)

    # Deterministic synthetic parameters (shapes follow the module __init__).
    # PyTorch inits positional_encodings to zeros; use small random values so
    # the "+ pe" path is actually exercised.
    emb_table = jax.random.normal(k_emb, (n_vocab, d_model), dtype=jnp.float32)
    pos_enc = 0.02 * jax.random.normal(k_pe, (max_len, 1, d_model), dtype=jnp.float32)

    ids = jax.random.randint(k_ids, (S, B), 0, n_vocab, dtype=jnp.int32)

    out = embeddings_with_learned_pe(ids, emb_table, pos_enc)
    out = jax.block_until_ready(out)

    # Pure-JAX reference of the PyTorch forward.
    ref = emb_table[ids] * math.sqrt(d_model) + pos_enc[:S]

    assert out.shape == (S, B, d_model), out.shape
    assert out.dtype == jnp.float32
    assert jnp.allclose(out, ref, atol=1e-4, rtol=1e-4), "mismatch vs reference"

    print("KERNEL_OK")
</pallas_src>

<mosaic_0001>
module attributes {stable_mosaic.version = 11 : i64} {
  func.func @_embed_pe_kernel(%arg0: i32, %arg1: memref<16x1xi32, #tpu.memory_space<vmem>>, %arg2: memref<16x1xi32, #tpu.memory_space<vmem>>, %arg3: memref<64x128xf32, #tpu.memory_space<vmem>>, %arg4: memref<8x128xf32, #tpu.memory_space<vmem>>, %arg5: memref<16x128xf32, #tpu.memory_space<vmem>>) attributes {dimension_semantics = [#tpu.dimension_semantics<parallel>], iteration_bounds = array<i64: 1>, scalar_prefetch = 0 : i64, scratch_operands = 0 : i64, tpu.core_type = #tpu.core_type<tc>, window_params = [{transform_indices = @transform_0, window_bounds = array<i64: 16, 1>}, {transform_indices = @transform_1, window_bounds = array<i64: 16, 1>}, {pipeline_mode = #tpu.pipeline_mode<synchronous>, transform_indices = @transform_2, window_bounds = array<i64: 64, 128>}, {pipeline_mode = #tpu.pipeline_mode<synchronous>, transform_indices = @transform_3, window_bounds = array<i64: 8, 128>}, {transform_indices = @transform_4, window_bounds = array<i64: 16, 128>}]} {
    %c0 = arith.constant 0 : index
    %c0_0 = arith.constant 0 : index
    %0 = vector.load %arg1[%c0, %c0_0] : memref<16x1xi32, #tpu.memory_space<vmem>>, vector<16x1xi32>
    %c0_1 = arith.constant 0 : index
    %c0_2 = arith.constant 0 : index
    %1 = vector.load %arg2[%c0_1, %c0_2] : memref<16x1xi32, #tpu.memory_space<vmem>>, vector<16x1xi32>
    %2 = tpu.iota {dimensions = array<i32: 1>} : vector<16x64xi32>
    %3 = tpu.iota {dimensions = array<i32: 1>} : vector<16x8xi32>
    %4 = vector.broadcast %0 : vector<16x1xi32> to vector<16x64xi32>
    %5 = arith.cmpi eq, %4, %2 : vector<16x64xi32>
    %cst = arith.constant 11.3137083 : f32
    %cst_3 = arith.constant 0.000000e+00 : f32
    %6 = vector.broadcast %cst : f32 to vector<16x64xf32>
    %7 = vector.broadcast %cst_3 : f32 to vector<16x64xf32>
    %8 = arith.select %5, %6, %7 : vector<16x64xi1>, vector<16x64xf32>
    %9 = vector.broadcast %1 : vector<16x1xi32> to vector<16x8xi32>
    %10 = arith.cmpi eq, %9, %3 : vector<16x8xi32>
    %cst_4 = arith.constant 1.000000e+00 : f32
    %cst_5 = arith.constant 0.000000e+00 : f32
    %11 = vector.broadcast %cst_4 : f32 to vector<16x8xf32>
    %12 = vector.broadcast %cst_5 : f32 to vector<16x8xf32>
    %13 = arith.select %10, %11, %12 : vector<16x8xi1>, vector<16x8xf32>
    %c0_6 = arith.constant 0 : index
    %c0_7 = arith.constant 0 : index
    %14 = vector.load %arg3[%c0_6, %c0_7] : memref<64x128xf32, #tpu.memory_space<vmem>>, vector<64x128xf32>
    %cst_8 = arith.constant dense<0.000000e+00> : vector<16x128xf32>
    %15 = tpu.matmul %8, %14, %cst_8 {dimension_numbers = #tpu.dot_dimension_numbers<[1], [0], [0], [1], [0, 0, 1, 1], [], []>, precision = #tpu.contract_precision<fp32>} : vector<16x64xf32>, vector<64x128xf32>, vector<16x128xf32> -> vector<16x128xf32>
    %c0_9 = arith.constant 0 : index
    %c0_10 = arith.constant 0 : index
    %16 = vector.load %arg4[%c0_9, %c0_10] : memref<8x128xf32, #tpu.memory_space<vmem>>, vector<8x128xf32>
    %cst_11 = arith.constant dense<0.000000e+00> : vector<16x128xf32>
    %17 = tpu.matmul %13, %16, %cst_11 {dimension_numbers = #tpu.dot_dimension_numbers<[1], [0], [0], [1], [0, 0, 1, 1], [], []>, precision = #tpu.contract_precision<fp32>} : vector<16x8xf32>, vector<8x128xf32>, vector<16x128xf32> -> vector<16x128xf32>
    %18 = arith.addf %15, %17 : vector<16x128xf32>
    %c0_12 = arith.constant 0 : index
    %c0_13 = arith.constant 0 : index
    %19 = vector.load %arg5[%c0_12, %c0_13] : memref<16x128xf32, #tpu.memory_space<vmem>>, vector<16x128xf32>
    tpu.vector_store %arg5[%c0_12, %c0_13], %18 {strides = array<i32>} : memref<16x128xf32, #tpu.memory_space<vmem>>, vector<16x128xf32>,
    return
  }
  func.func @transform_0(%arg0: i32) -> (i32, i32) {
    %c0_i32 = arith.constant 0 : i32
    %c0_i32_0 = arith.constant 0 : i32
    return %arg0, %c0_i32 : i32, i32
  }
  func.func @transform_1(%arg0: i32) -> (i32, i32) {
    %c0_i32 = arith.constant 0 : i32
    %c0_i32_0 = arith.constant 0 : i32
    return %arg0, %c0_i32 : i32, i32
  }
  func.func @transform_2(%arg0: i32) -> (i32, i32) {
    %c0_i32 = arith.constant 0 : i32
    %c0_i32_0 = arith.constant 0 : i32
    %c0_i32_1 = arith.constant 0 : i32
    return %c0_i32, %c0_i32_0 : i32, i32
  }
  func.func @transform_3(%arg0: i32) -> (i32, i32) {
    %c0_i32 = arith.constant 0 : i32
    %c0_i32_0 = arith.constant 0 : i32
    %c0_i32_1 = arith.constant 0 : i32
    return %c0_i32, %c0_i32_0 : i32, i32
  }
  func.func @transform_4(%arg0: i32) -> (i32, i32) {
    %c0_i32 = arith.constant 0 : i32
    %c0_i32_0 = arith.constant 0 : i32
    return %arg0, %c0_i32 : i32, i32
  }
}

</mosaic_0001>

<llo_original>
// kernel: tpu_custom_call.1
$region0: #{tpu_custom_call.1}
  #allocation0 [shape = 'u32[]', space=smem, size = 0x4, offset = 0x4, fixed_abs, tag = 'smem constant byte address 0x4 - core index']
  #allocation1 [shape = 'u32[72,128]{1,0:T(1,128)}', space=vmem, size = 0x9000, scoped, tag = 'internal scratch']
  %s0 = inlined_call_operand.vmem [shape: s32[16,1], index: 0, kind: input, shape index: {}]
  %s1 = inlined_call_operand.vmem [shape: s32[16,1], index: 1, kind: input, shape index: {}]
  %s2 = inlined_call_operand.hbm [shape: f32[64,128], index: 2, kind: input, shape index: {}]
  %s3 = inlined_call_operand.vmem [shape: f32[8,128], index: 3, kind: input, shape index: {}]
  %s4 = inlined_call_operand.hbm [shape: f32[16,128], index: 4, kind: output, shape index: {}]
  %s5 = sld [smem:[#allocation0]]
  $region30: #{tpu_custom_call.1} parent=0
    _
  %s7 = ssub.s32 1, %s5
  %s8 = scalar_select 0, %s7, %s5
  $region1: #{tpu_custom_call.1} parent=0
    #allocation2 [shape = 'u8[32768]{0}', space=vmem, size = 0x8000, scoped, tag = 'input window, operand 2, single buffered']
    #allocation3 [shape = 's32[1]{0}', space=sflag, size = 0x4, scoped, tag = 'scoped memory for tpu_custom_call.1']
    #allocation4 [shape = 's32[1]{0}', space=sflag, size = 0x4, scoped, tag = 'scoped memory for tpu_custom_call.1']
    #allocation5 [shape = 'u8[8192]{0}', space=vmem, size = 0x2000, scoped, tag = 'output window, operand 0, single buffered']
    %9 = vsyncpa [#allocation3], 0
    %10 = vsyncpa [#allocation4], 0
    // Predicated region
    $region2: #{tpu_custom_call.1} parent=1 // pred_check
      _
    $region3: #{tpu_custom_call.1} parent=1 // pred_check_branch
      %12 = sbr.rel (0) target = $region5
    $region4: #{tpu_custom_call.1} parent=1 // pred_region
      _
    $region5: #{tpu_custom_call.1} parent=1 // pred_fallthru
      _
    // Predicated region
    $region6: #{tpu_custom_call.1} parent=1 // pred_check
      _
    $region7: #{tpu_custom_call.1} parent=1 // pred_check_branch
      %14 = sbr.rel (0) target = $region9
    $region8: #{tpu_custom_call.1} parent=1 // pred_region
      _
    $region9: #{tpu_custom_call.1} parent=1 // pred_fallthru
      _
    // Predicated region
    $region10: #{tpu_custom_call.1} parent=1 // pred_check
      _
    $region11: #{tpu_custom_call.1} parent=1 // pred_check_branch
      %16 = sbr.rel (0) target = $region13
    $region12: #{tpu_custom_call.1} parent=1 // pred_region
      %18 = vsyncadd [#allocation3], 0
      %s19 = sshll.u32 %s2, 4
      %s20 = int_to_ptr.hbm [resolvable:$true] %s19
      %s21 = sshll.u32 [#allocation2], 4
      %s22 = int_to_ptr.vmem [resolvable:$true] %s21
      %27 = dma.hbm_to_vmem [thread:$0]  %s20, 1024, %s22, [#allocation3], 128, 128, 8
    $region13: #{tpu_custom_call.1} parent=1 // pred_fallthru
      _
    // Predicated region
    $region14: #{tpu_custom_call.1} parent=1 // pred_check
      _
    $region15: #{tpu_custom_call.1} parent=1 // pred_check_branch
      %29 = sbr.rel (0) target = $region17
    $region16: #{tpu_custom_call.1} parent=1 // pred_region
      _
    $region17: #{tpu_custom_call.1} parent=1 // pred_fallthru
      _
    // Predicated region
    $region18: #{tpu_custom_call.1} parent=1 // pred_check
      _
    $region19: #{tpu_custom_call.1} parent=1 // pred_check_branch
      %31 = sbr.rel (0) target = $region21
    $region20: #{tpu_custom_call.1} parent=1 // pred_region
      %33 = dma.done [#allocation3], 1024
    $region21: #{tpu_custom_call.1} parent=1 // pred_fallthru
      _
    %v34 = vld [vmem:[%s0] sm:$0xff]
    %v35 = vld [vmem:[%s0 + $0x8] sm:$0xff]
    %v36 = vld [vmem:[%s1] sm:$0xff]
    %v37 = vld [vmem:[%s1 + $0x8] sm:$0xff]
    %v38 = vlaneseq
    %v39 = vand.u32 %v38, 127
    %40 = vset.pattern.permute.xlu0 0
    %41 = vperm.xlu0 %40, %v34
    %v42 = vpop.permute.xlu0 %41
    %43 = vset.pattern.permute.xlu0 0
    %44 = vperm.xlu0 %43, %v35
    %v45 = vpop.permute.xlu0 %44
    %vm46 = vcmp.eq.s32.totalorder %v42, %v39
    %vm47 = vcmp.eq.s32.totalorder %v45, %v39
    %v48 = vsel %vm46, 11.313708, 0.0
    %v49 = vsel %vm47, 11.313708, 0.0
    %50 = vset.pattern.permute.xlu0 0
    %51 = vperm.xlu0 %50, %v36
    %v52 = vpop.permute.xlu0 %51
    %53 = vset.pattern.permute.xlu0 0
    %54 = vperm.xlu0 %53, %v37
    %v55 = vpop.permute.xlu0 %54
    %vm56 = vcmp.eq.s32.totalorder %v52, %v39
    %vm57 = vcmp.eq.s32.totalorder %v55, %v39
    %v58 = vsel %vm56, 1.0, 0.0
    %v59 = vsel %vm57, 1.0, 0.0
    %v60 = vld [vmem:[#allocation2] sm:$0xff]
    %v61 = vld [vmem:[#allocation2 + $0x8] sm:$0xff]
    %v62 = vld [vmem:[#allocation2 + $0x10] sm:$0xff]
    %v63 = vld [vmem:[#allocation2 + $0x18] sm:$0xff]
    %v64 = vld [vmem:[#allocation2 + $0x20] sm:$0xff]
    %v65 = vld [vmem:[#allocation2 + $0x28] sm:$0xff]
    %v66 = vld [vmem:[#allocation2 + $0x30] sm:$0xff]
    %v67 = vld [vmem:[#allocation2 + $0x38] sm:$0xff]
    %v68 = vld [vmem:[%s3] sm:$0xff]
    %vm69 = vcmask 64512
    %v71 = vsel %vm69, %v58, 0
    %v74 = vsel %vm69, %v59, 0
    %76 = vmatpush.msra.mxu0 0.0
    %77 = vmatpush.msra.mxu0 0.0
    %78 = vmatpush.msra.mxu0 0.0
    %79 = vmatpush.msra.mxu0 0.0
    %80 = vmatpush.msra.mxu0 0.0
    %81 = vmatpush.msra.mxu0 0.0
    %82 = vmatpush.msra.mxu0 0.0
    %83 = vmatpush.msra.mxu0 0.0
    %84 = vmatpush.msra.mxu0 0.0
    %85 = vmatpush.msra.mxu0 0.0
    %86 = vmatpush.msra.mxu0 0.0
    %87 = vmatpush.msra.mxu0 0.0
    %88 = vmatpush.msra.mxu0 0.0
    %89 = vmatpush.msra.mxu0 0.0
    %90 = vmatpush.msra.mxu0 0.0
    %v91 = vand.u32 %v68, 4294901760
    %92 = vmatpush.msra.mxu0 %v91
    %v93 = vand.u32 %v71, 4294901760
    %v94 = vsub.f32 %v71, %v93
    %v95 = vand.u32 %v94, 4294901760
    %v96 = vsub.f32 %v94, %v95
    %v97 = vand.u32 %v96, 4294901760
    %98 = vmatmul.f32.gmra.mxu0 %v97
    %v99 = vpop.f32.mrf.mxu0
    %v100 = vadd.f32 0.0, %v99
    %v101 = vand.u32 %v74, 4294901760
    %v102 = vsub.f32 %v74, %v101
    %v103 = vand.u32 %v102, 4294901760
    %v104 = vsub.f32 %v102, %v103
    %v105 = vand.u32 %v104, 4294901760
    %106 = vmatmul.f32.gmra.mxu0 %v105
    %v107 = vpop.f32.mrf.mxu0
    %v108 = vadd.f32 0.0, %v107
    %109 = vdwg.mxu0
    %110 = vmatpush.msra.mxu0 0.0
    %111 = vmatpush.msra.mxu0 0.0
    %112 = vmatpush.msra.mxu0 0.0
    %113 = vmatpush.msra.mxu0 0.0
    %114 = vmatpush.msra.mxu0 0.0
    %115 = vmatpush.msra.mxu0 0.0
    %116 = vmatpush.msra.mxu0 0.0
    %117 = vmatpush.msra.mxu0 0.0
    %118 = vmatpush.msra.mxu0 0.0
    %119 = vmatpush.msra.mxu0 0.0
    %120 = vmatpush.msra.mxu0 0.0
    %121 = vmatpush.msra.mxu0 0.0
    %122 = vmatpush.msra.mxu0 0.0
    %123 = vmatpush.msra.mxu0 0.0
    %124 = vmatpush.msra.mxu0 0.0
    %v125 = vand.u32 %v68, 4294901760
    %v126 = vsub.f32 %v68, %v125
    %v127 = vand.u32 %v126, 4294901760
    %v128 = vsub.f32 %v126, %v127
    %v129 = vand.u32 %v128, 4294901760
    %130 = vmatpush.msra.mxu0 %v129
    %v131 = vand.u32 %v71, 4294901760
    %132 = vmatmul.f32.gmra.mxu0 %v131
    %v133 = vpop.f32.mrf.mxu0
    %v134 = vadd.f32 %v100, %v133
    %v135 = vand.u32 %v74, 4294901760
    %136 = vmatmul.f32.gmra.mxu0 %v135
    %v137 = vpop.f32.mrf.mxu0
    %v138 = vadd.f32 %v108, %v137
    %139 = vdwg.mxu0
    %140 = vmatpush.msra.mxu0 0.0
    %141 = vmatpush.msra.mxu0 0.0
    %142 = vmatpush.msra.mxu0 0.0
    %143 = vmatpush.msra.mxu0 0.0
    %144 = vmatpush.msra.mxu0 0.0
    %145 = vmatpush.msra.mxu0 0.0
    %146 = vmatpush.msra.mxu0 0.0
    %147 = vmatpush.msra.mxu0 0.0
    %148 = vmatpush.msra.mxu0 0.0
    %149 = vmatpush.msra.mxu0 0.0
    %150 = vmatpush.msra.mxu0 0.0
    %151 = vmatpush.msra.mxu0 0.0
    %152 = vmatpush.msra.mxu0 0.0
    %153 = vmatpush.msra.mxu0 0.0
    %154 = vmatpush.msra.mxu0 0.0
    %v155 = vand.u32 %v68, 4294901760
    %v156 = vsub.f32 %v68, %v155
    %157 = vmatpush.msra.mxu0 %v156
    %v158 = vand.u32 %v71, 4294901760
    %v159 = vsub.f32 %v71, %v158
    %160 = vmatmul.f32.gmra.mxu0 %v159
    %v161 = vpop.f32.mrf.mxu0
    %v162 = vadd.f32 %v134, %v161
    %v163 = vand.u32 %v74, 4294901760
    %v164 = vsub.f32 %v74, %v163
    %165 = vmatmul.f32.gmra.mxu0 %v164
    %v166 = vpop.f32.mrf.mxu0
    %v167 = vadd.f32 %v138, %v166
    %168 = vdwg.mxu0
    %169 = vmatpush.msra.mxu0 0.0
    %170 = vmatpush.msra.mxu0 0.0
    %171 = vmatpush.msra.mxu0 0.0
    %172 = vmatpush.msra.mxu0 0.0
    %173 = vmatpush.msra.mxu0 0.0
    %174 = vmatpush.msra.mxu0 0.0
    %175 = vmatpush.msra.mxu0 0.0
    %176 = vmatpush.msra.mxu0 0.0
    %177 = vmatpush.msra.mxu0 0.0
    %178 = vmatpush.msra.mxu0 0.0
    %179 = vmatpush.msra.mxu0 0.0
    %180 = vmatpush.msra.mxu0 0.0
    %181 = vmatpush.msra.mxu0 0.0
    %182 = vmatpush.msra.mxu0 0.0
    %183 = vmatpush.msra.mxu0 0.0
    %v184 = vand.u32 %v68, 4294901760
    %185 = vmatpush.msra.mxu0 %v184
    %v186 = vand.u32 %v71, 4294901760
    %v187 = vsub.f32 %v71, %v186
    %v188 = vand.u32 %v187, 4294901760
    %189 = vmatmul.f32.gmra.mxu0 %v188
    %v190 = vpop.f32.mrf.mxu0
    %v191 = vadd.f32 %v162, %v190
    %v192 = vand.u32 %v74, 4294901760
    %v193 = vsub.f32 %v74, %v192
    %v194 = vand.u32 %v193, 4294901760
    %195 = vmatmul.f32.gmra.mxu0 %v194
    %v196 = vpop.f32.mrf.mxu0
    %v197 = vadd.f32 %v167, %v196
    %198 = vdwg.mxu0
    %199 = vmatpush.msra.mxu0 0.0
    %200 = vmatpush.msra.mxu0 0.0
    %201 = vmatpush.msra.mxu0 0.0
    %202 = vmatpush.msra.mxu0 0.0
    %203 = vmatpush.msra.mxu0 0.0
    %204 = vmatpush.msra.mxu0 0.0
    %205 = vmatpush.msra.mxu0 0.0
    %206 = vmatpush.msra.mxu0 0.0
    %207 = vmatpush.msra.mxu0 0.0
    %208 = vmatpush.msra.mxu0 0.0
    %209 = vmatpush.msra.mxu0 0.0
    %210 = vmatpush.msra.mxu0 0.0
    %211 = vmatpush.msra.mxu0 0.0
    %212 = vmatpush.msra.mxu0 0.0
    %213 = vmatpush.msra.mxu0 0.0
    %v214 = vand.u32 %v68, 4294901760
    %v215 = vsub.f32 %v68, %v214
    %v216 = vand.u32 %v215, 4294901760
    %217 = vmatpush.msra.mxu0 %v216
    %v218 = vand.u32 %v71, 4294901760
    %219 = vmatmul.f32.gmra.mxu0 %v218
    %v220 = vpop.f32.mrf.mxu0
    %v221 = vadd.f32 %v191, %v220
    %v222 = vand.u32 %v74, 4294901760
    %223 = vmatmul.f32.gmra.mxu0 %v222
    %v224 = vpop.f32.mrf.mxu0
    %v225 = vadd.f32 %v197, %v224
    %226 = vdwg.mxu0
    %227 = vmatpush.msra.mxu0 0.0
    %228 = vmatpush.msra.mxu0 0.0
    %229 = vmatpush.msra.mxu0 0.0
    %230 = vmatpush.msra.mxu0 0.0
    %231 = vmatpush.msra.mxu0 0.0
    %232 = vmatpush.msra.mxu0 0.0
    %233 = vmatpush.msra.mxu0 0.0
    %234 = vmatpush.msra.mxu0 0.0
    %235 = vmatpush.msra.mxu0 0.0
    %236 = vmatpush.msra.mxu0 0.0
    %237 = vmatpush.msra.mxu0 0.0
    %238 = vmatpush.msra.mxu0 0.0
    %239 = vmatpush.msra.mxu0 0.0
    %240 = vmatpush.msra.mxu0 0.0
    %241 = vmatpush.msra.mxu0 0.0
    %v242 = vand.u32 %v68, 4294901760
    %243 = vmatpush.msra.mxu0 %v242
    %v244 = vand.u32 %v71, 4294901760
    %245 = vmatmul.f32.gmra.mxu0 %v244
    %v246 = vpop.f32.mrf.mxu0
    %v247 = vadd.f32 %v221, %v246
    %v248 = vand.u32 %v74, 4294901760
    %249 = vmatmul.f32.gmra.mxu0 %v248
    %v250 = vpop.f32.mrf.mxu0
    %v251 = vadd.f32 %v225, %v250
    %252 = vdwg.mxu0
    %vm253 = vcmask 523264
    %v255 = vsel %vm253, %v48, 0
    %v258 = vsel %vm253, %v49, 0
    %260 = vmatpush.msra.mxu0 0.0
    %261 = vmatpush.msra.mxu0 0.0
    %262 = vmatpush.msra.mxu0 0.0
    %263 = vmatpush.msra.mxu0 0.0
    %264 = vmatpush.msra.mxu0 0.0
    %265 = vmatpush.msra.mxu0 0.0
    %266 = vmatpush.msra.mxu0 0.0
    %267 = vmatpush.msra.mxu0 0.0
    %v268 = vand.u32 %v67, 4294901760
    %269 = vmatpush.msra.mxu0 %v268
    %v270 = vand.u32 %v66, 4294901760
    %271 = vmatpush.msra.mxu0 %v270
    %v272 = vand.u32 %v65, 4294901760
    %273 = vmatpush.msra.mxu0 %v272
    %v274 = vand.u32 %v64, 4294901760
    %275 = vmatpush.msra.mxu0 %v274
    %v276 = vand.u32 %v63, 4294901760
    %277 = vmatpush.msra.mxu0 %v276
    %v278 = vand.u32 %v62, 4294901760
    %279 = vmatpush.msra.mxu0 %v278
    %v280 = vand.u32 %v61, 4294901760
    %281 = vmatpush.msra.mxu0 %v280
    %v282 = vand.u32 %v60, 4294901760
    %283 = vmatpush.msra.mxu0 %v282
    %v284 = vand.u32 %v255, 4294901760
    %v285 = vsub.f32 %v255, %v284
    %v286 = vand.u32 %v285, 4294901760
    %v287 = vsub.f32 %v285, %v286
    %v288 = vand.u32 %v287, 4294901760
    %289 = vmatmul.f32.gmra.mxu0 %v288
    %v290 = vpop.f32.mrf.mxu0
    %v291 = vadd.f32 %v247, %v290
    %v292 = vand.u32 %v258, 4294901760
    %v293 = vsub.f32 %v258, %v292
    %v294 = vand.u32 %v293, 4294901760
    %v295 = vsub.f32 %v293, %v294
    %v296 = vand.u32 %v295, 4294901760
    %297 = vmatmul.f32.gmra.mxu0 %v296
    %v298 = vpop.f32.mrf.mxu0
    %v299 = vadd.f32 %v251, %v298
    %300 = vdwg.mxu0
    %301 = vmatpush.msra.mxu0 0.0
    %302 = vmatpush.msra.mxu0 0.0
    %303 = vmatpush.msra.mxu0 0.0
    %304 = vmatpush.msra.mxu0 0.0
    %305 = vmatpush.msra.mxu0 0.0
    %306 = vmatpush.msra.mxu0 0.0
    %307 = vmatpush.msra.mxu0 0.0
    %308 = vmatpush.msra.mxu0 0.0
    %v309 = vand.u32 %v67, 4294901760
    %v310 = vsub.f32 %v67, %v309
    %v311 = vand.u32 %v310, 4294901760
    %v312 = vsub.f32 %v310, %v311
    %v313 = vand.u32 %v312, 4294901760
    %314 = vmatpush.msra.mxu0 %v313
    %v315 = vand.u32 %v66, 4294901760
    %v316 = vsub.f32 %v66, %v315
    %v317 = vand.u32 %v316, 4294901760
    %v318 = vsub.f32 %v316, %v317
    %v319 = vand.u32 %v318, 4294901760
    %320 = vmatpush.msra.mxu0 %v319
    %v321 = vand.u32 %v65, 4294901760
    %v322 = vsub.f32 %v65, %v321
    %v323 = vand.u32 %v322, 4294901760
    %v324 = vsub.f32 %v322, %v323
    %v325 = vand.u32 %v324, 4294901760
    %326 = vmatpush.msra.mxu0 %v325
    %v327 = vand.u32 %v64, 4294901760
    %v328 = vsub.f32 %v64, %v327
    %v329 = vand.u32 %v328, 4294901760
    %v330 = vsub.f32 %v328, %v329
    %v331 = vand.u32 %v330, 4294901760
    %332 = vmatpush.msra.mxu0 %v331
    %v333 = vand.u32 %v63, 4294901760
    %v334 = vsub.f32 %v63, %v333
    %v335 = vand.u32 %v334, 4294901760
    %v336 = vsub.f32 %v334, %v335
    %v337 = vand.u32 %v336, 4294901760
    %338 = vmatpush.msra.mxu0 %v337
    %v339 = vand.u32 %v62, 4294901760
    %v340 = vsub.f32 %v62, %v339
    %v341 = vand.u32 %v340, 4294901760
    %v342 = vsub.f32 %v340, %v341
    %v343 = vand.u32 %v342, 4294901760
    %344 = vmatpush.msra.mxu0 %v343
    %v345 = vand.u32 %v61, 4294901760
    %v346 = vsub.f32 %v61, %v345
    %v347 = vand.u32 %v346, 4294901760
    %v348 = vsub.f32 %v346, %v347
    %v349 = vand.u32 %v348, 4294901760
    %350 = vmatpush.msra.mxu0 %v349
    %v351 = vand.u32 %v60, 4294901760
    %v352 = vsub.f32 %v60, %v351
    %v353 = vand.u32 %v352, 4294901760
    %v354 = vsub.f32 %v352, %v353
    %v355 = vand.u32 %v354, 4294901760
    %356 = vmatpush.msra.mxu0 %v355
    %v357 = vand.u32 %v255, 4294901760
    %358 = vmatmul.f32.gmra.mxu0 %v357
    %v359 = vpop.f32.mrf.mxu0
    %v360 = vadd.f32 %v291, %v359
    %v361 = vand.u32 %v258, 4294901760
    %362 = vmatmul.f32.gmra.mxu0 %v361
    %v363 = vpop.f32.mrf.mxu0
    %v364 = vadd.f32 %v299, %v363
    %365 = vdwg.mxu0
    %366 = vmatpush.msra.mxu0 0.0
    %367 = vmatpush.msra.mxu0 0.0
    %368 = vmatpush.msra.mxu0 0.0
    %369 = vmatpush.msra.mxu0 0.0
    %370 = vmatpush.msra.mxu0 0.0
    %371 = vmatpush.msra.mxu0 0.0
    %372 = vmatpush.msra.mxu0 0.0
    %373 = vmatpush.msra.mxu0 0.0
    %v374 = vand.u32 %v67, 4294901760
    %v375 = vsub.f32 %v67, %v374
    %376 = vmatpush.msra.mxu0 %v375
    %v377 = vand.u32 %v66, 4294901760
    %v378 = vsub.f32 %v66, %v377
    %379 = vmatpush.msra.mxu0 %v378
    %v380 = vand.u32 %v65, 4294901760
    %v381 = vsub.f32 %v65, %v380
    %382 = vmatpush.msra.mxu0 %v381
    %v383 = vand.u32 %v64, 4294901760
    %v384 = vsub.f32 %v64, %v383
    %385 = vmatpush.msra.mxu0 %v384
    %v386 = vand.u32 %v63, 4294901760
    %v387 = vsub.f32 %v63, %v386
    %388 = vmatpush.msra.mxu0 %v387
    %v389 = vand.u32 %v62, 4294901760
    %v390 = vsub.f32 %v62, %v389
    %391 = vmatpush.msra.mxu0 %v390
    %v392 = vand.u32 %v61, 4294901760
    %v393 = vsub.f32 %v61, %v392
    %394 = vmatpush.msra.mxu0 %v393
    %v395 = vand.u32 %v60, 4294901760
    %v396 = vsub.f32 %v60, %v395
    %397 = vmatpush.msra.mxu0 %v396
    %v398 = vand.u32 %v255, 4294901760
    %v399 = vsub.f32 %v255, %v398
    %400 = vmatmul.f32.gmra.mxu0 %v399
    %v401 = vpop.f32.mrf.mxu0
    %v402 = vadd.f32 %v360, %v401
    %v403 = vand.u32 %v258, 4294901760
    %v404 = vsub.f32 %v258, %v403
    %405 = vmatmul.f32.gmra.mxu0 %v404
    %v406 = vpop.f32.mrf.mxu0
    %v407 = vadd.f32 %v364, %v406
    %408 = vdwg.mxu0
    %409 = vmatpush.msra.mxu0 0.0
    %410 = vmatpush.msra.mxu0 0.0
    %411 = vmatpush.msra.mxu0 0.0
    %412 = vmatpush.msra.mxu0 0.0
    %413 = vmatpush.msra.mxu0 0.0
    %414 = vmatpush.msra.mxu0 0.0
    %415 = vmatpush.msra.mxu0 0.0
    %416 = vmatpush.msra.mxu0 0.0
    %v417 = vand.u32 %v67, 4294901760
    %418 = vmatpush.msra.mxu0 %v417
    %v419 = vand.u32 %v66, 4294901760
    %420 = vmatpush.msra.mxu0 %v419
    %v421 = vand.u32 %v65, 4294901760
    %422 = vmatpush.msra.mxu0 %v421
    %v423 = vand.u32 %v64, 4294901760
    %424 = vmatpush.msra.mxu0 %v423
    %v425 = vand.u32 %v63, 4294901760
    %426 = vmatpush.msra.mxu0 %v425
    %v427 = vand.u32 %v62, 4294901760
    %428 = vmatpush.msra.mxu0 %v427
    %v429 = vand.u32 %v61, 4294901760
    %430 = vmatpush.msra.mxu0 %v429
    %v431 = vand.u32 %v60, 4294901760
    %432 = vmatpush.msra.mxu0 %v431
    %v433 = vand.u32 %v255, 4294901760
    %v434 = vsub.f32 %v255, %v433
    %v435 = vand.u32 %v434, 4294901760
    %436 = vmatmul.f32.gmra.mxu0 %v435
    %v437 = vpop.f32.mrf.mxu0
    %v438 = vadd.f32 %v402, %v437
    %v439 = vand.u32 %v258, 4294901760
    %v440 = vsub.f32 %v258, %v439
    %v441 = vand.u32 %v440, 4294901760
    %442 = vmatmul.f32.gmra.mxu0 %v441
    %v443 = vpop.f32.mrf.mxu0
    %v444 = vadd.f32 %v407, %v443
    %445 = vdwg.mxu0
    %446 = vmatpush.msra.mxu0 0.0
    %447 = vmatpush.msra.mxu0 0.0
    %448 = vmatpush.msra.mxu0 0.0
    %449 = vmatpush.msra.mxu0 0.0
    %450 = vmatpush.msra.mxu0 0.0
    %451 = vmatpush.msra.mxu0 0.0
    %452 = vmatpush.msra.mxu0 0.0
    %453 = vmatpush.msra.mxu0 0.0
    %v454 = vand.u32 %v67, 4294901760
    %v455 = vsub.f32 %v67, %v454
    %v456 = vand.u32 %v455, 4294901760
    %457 = vmatpush.msra.mxu0 %v456
    %v458 = vand.u32 %v66, 4294901760
    %v459 = vsub.f32 %v66, %v458
    %v460 = vand.u32 %v459, 4294901760
    %461 = vmatpush.msra.mxu0 %v460
    %v462 = vand.u32 %v65, 4294901760
    %v463 = vsub.f32 %v65, %v462
    %v464 = vand.u32 %v463, 4294901760
    %465 = vmatpush.msra.mxu0 %v464
    %v466 = vand.u32 %v64, 4294901760
    %v467 = vsub.f32 %v64, %v466
    %v468 = vand.u32 %v467, 4294901760
    %469 = vmatpush.msra.mxu0 %v468
    %v470 = vand.u32 %v63, 4294901760
    %v471 = vsub.f32 %v63, %v470
    %v472 = vand.u32 %v471, 4294901760
    %473 = vmatpush.msra.mxu0 %v472
    %v474 = vand.u32 %v62, 4294901760
    %v475 = vsub.f32 %v62, %v474
    %v476 = vand.u32 %v475, 4294901760
    %477 = vmatpush.msra.mxu0 %v476
    %v478 = vand.u32 %v61, 4294901760
    %v479 = vsub.f32 %v61, %v478
    %v480 = vand.u32 %v479, 4294901760
    %481 = vmatpush.msra.mxu0 %v480
    %v482 = vand.u32 %v60, 4294901760
    %v483 = vsub.f32 %v60, %v482
    %v484 = vand.u32 %v483, 4294901760
    %485 = vmatpush.msra.mxu0 %v484
    %v486 = vand.u32 %v255, 4294901760
    %487 = vmatmul.f32.gmra.mxu0 %v486
    %v488 = vpop.f32.mrf.mxu0
    %v489 = vadd.f32 %v438, %v488
    %v490 = vand.u32 %v258, 4294901760
    %491 = vmatmul.f32.gmra.mxu0 %v490
    %v492 = vpop.f32.mrf.mxu0
    %v493 = vadd.f32 %v444, %v492
    %494 = vdwg.mxu0
    %495 = vmatpush.msra.mxu0 0.0
    %496 = vmatpush.msra.mxu0 0.0
    %497 = vmatpush.msra.mxu0 0.0
    %498 = vmatpush.msra.mxu0 0.0
    %499 = vmatpush.msra.mxu0 0.0
    %500 = vmatpush.msra.mxu0 0.0
    %501 = vmatpush.msra.mxu0 0.0
    %502 = vmatpush.msra.mxu0 0.0
    %v503 = vand.u32 %v67, 4294901760
    %504 = vmatpush.msra.mxu0 %v503
    %v505 = vand.u32 %v66, 4294901760
    %506 = vmatpush.msra.mxu0 %v505
    %v507 = vand.u32 %v65, 4294901760
    %508 = vmatpush.msra.mxu0 %v507
    %v509 = vand.u32 %v64, 4294901760
    %510 = vmatpush.msra.mxu0 %v509
    %v511 = vand.u32 %v63, 4294901760
    %512 = vmatpush.msra.mxu0 %v511
    %v513 = vand.u32 %v62, 4294901760
    %514 = vmatpush.msra.mxu0 %v513
    %v515 = vand.u32 %v61, 4294901760
    %516 = vmatpush.msra.mxu0 %v515
    %v517 = vand.u32 %v60, 4294901760
    %518 = vmatpush.msra.mxu0 %v517
    %v519 = vand.u32 %v255, 4294901760
    %520 = vmatmul.f32.gmra.mxu0 %v519
    %v521 = vpop.f32.mrf.mxu0
    %v522 = vadd.f32 %v489, %v521
    %v523 = vand.u32 %v258, 4294901760
    %524 = vmatmul.f32.gmra.mxu0 %v523
    %v525 = vpop.f32.mrf.mxu0
    %v526 = vadd.f32 %v493, %v525
    %527 = vdwg.mxu0
    %528 = vst [vmem:[#allocation5] sm:$0xff] %v522
    %529 = vst [vmem:[#allocation5 + $0x8] sm:$0xff] %v526
    // Predicated region
    $region22: #{tpu_custom_call.1} parent=1 // pred_check
      _
    $region23: #{tpu_custom_call.1} parent=1 // pred_check_branch
      %531 = sbr.rel (0) target = $region25
    $region24: #{tpu_custom_call.1} parent=1 // pred_region
      %533 = vsyncadd [#allocation4], 0
      %s534 = sshll.u32 [#allocation5], 4
      %s535 = int_to_ptr.vmem [resolvable:$true] %s534
      %s536 = sshll.u32 %s4, 4
      %s537 = int_to_ptr.hbm [resolvable:$true] %s536
      %542 = dma.vmem_to_hbm [thread:$0]  %s535, 256, %s537, [#allocation4], 128, 128, 8
    $region25: #{tpu_custom_call.1} parent=1 // pred_fallthru
      _
    // Predicated region
    $region26: #{tpu_custom_call.1} parent=1 // pred_check
      _
    $region27: #{tpu_custom_call.1} parent=1 // pred_check_branch
      %544 = sbr.rel (0) target = $region29
    $region28: #{tpu_custom_call.1} parent=1 // pred_region
      %546 = dma.done [#allocation4], 256
    $region29: #{tpu_custom_call.1} parent=1 // pred_fallthru
      _
    %547 = vsyncpa [#allocation3], 1
    %548 = vsyncpa [#allocation4], 1

</llo_original>
